<compile_context>
chip_gen: v7x
topology: tpu7x:2x2x1
jax: 0.10.0
libtpu: 0.0.40
codegen_flags: <defaults>
</compile_context>

<pallas_src>
import jax
import jax.numpy as jnp
from jax.experimental import pallas as pl
from jax.experimental.pallas import tpu as pltpu


# --------------------------------------------------------------------------- #
# Kernel: one matmul + bias add per batch tile.
# --------------------------------------------------------------------------- #
def telescopic_kernel(x_ref, w_ref, b_ref, out_ref):
    acc = jnp.dot(x_ref[...], w_ref[...],
                  preferred_element_type=jnp.float32)        # (TB, n_levels) f32
    out_ref[...] = (acc + b_ref[...]).astype(out_ref.dtype)


# --------------------------------------------------------------------------- #
# Trace-time constant construction (plain JAX glue, runs once).
# --------------------------------------------------------------------------- #
def _suffix_sum_matrix(k: int) -> jnp.ndarray:
    # T[kk, j] = 1 if kk >= j, shape (K, K+1); last column all zeros — this
    # absorbs the appended zero column of the PyTorch reference exactly.
    rows = jnp.arange(k)[:, None]
    cols = jnp.arange(k + 1)[None, :]
    return (rows >= cols).astype(jnp.float32)


def _linear_interp_matrix(in_size: int, out_size: int) -> jnp.ndarray:
    # Matches torch F.interpolate(mode='linear', align_corners=False):
    #   src = (i + 0.5) * (in/out) - 0.5, clamped below at 0, edge-replicated.
    scale = in_size / out_size
    i = jnp.arange(out_size, dtype=jnp.float32)
    src = jnp.maximum((i + 0.5) * scale - 0.5, 0.0)
    idx0 = jnp.clip(jnp.floor(src).astype(jnp.int32), 0, in_size - 1)
    idx1 = jnp.minimum(idx0 + 1, in_size - 1)
    lam = src - idx0.astype(jnp.float32)
    m = jnp.zeros((in_size, out_size), dtype=jnp.float32)
    cols = jnp.arange(out_size)
    m = m.at[idx0, cols].add(1.0 - lam)
    m = m.at[idx1, cols].add(lam)
    return m


def _round_up(x: int, m: int) -> int:
    return ((x + m - 1) // m) * m


# --------------------------------------------------------------------------- #
# Wrapper: fold constants into the weight, tile the batch, call pallas_call.
# --------------------------------------------------------------------------- #
def telescopic_forward(x, w, b, n_levels: int, block_b: int = 32768,
                       out_dtype=jnp.float32):
    B, D = x.shape
    K = w.shape[1]

    # Fold suffix-sum and interpolation matrices into the Linear layer (f32).
    tri = _suffix_sum_matrix(K)                              # (K, K+1)
    interp = _linear_interp_matrix(K + 1, n_levels)          # (K+1, n_levels)
    w_fused = (w.astype(jnp.float32) @ tri) @ interp         # (D, n_levels)
    b_fused = ((b.astype(jnp.float32) @ tri) @ interp).reshape(1, n_levels)

    # Batch tile: multiple of 8 sublanes, large enough that per-step DMA
    # dominates the ~0.35 us grid-step overhead; partial last block is masked.
    tb = min(block_b, _round_up(B, 8))
    grid = (pl.cdiv(B, tb),)

    x_bytes = B * D * jnp.dtype(x.dtype).itemsize
    out_bytes = B * n_levels * jnp.dtype(out_dtype).itemsize
    cost = pl.CostEstimate(
        flops=2 * B * D * n_levels + B * n_levels,
        transcendentals=0,
        bytes_accessed=x_bytes + out_bytes + 4 * (D * n_levels + n_levels),
    )

    return pl.pallas_call(
        telescopic_kernel,
        out_shape=jax.ShapeDtypeStruct((B, n_levels), out_dtype),
        grid=grid,
        in_specs=[
            pl.BlockSpec((tb, D), lambda i: (i, 0)),            # x tile (native dtype)
            pl.BlockSpec((D, n_levels), lambda i: (0, 0)),      # fused W (grid-invariant)
            pl.BlockSpec((1, n_levels), lambda i: (0, 0)),      # fused b (grid-invariant)
        ],
        out_specs=pl.BlockSpec((tb, n_levels), lambda i: (i, 0)),
        compiler_params=pltpu.CompilerParams(
            dimension_semantics=("parallel",)),
        cost_estimate=cost,
    )(x, w_fused, b_fused)


# --------------------------------------------------------------------------- #
# Pure-JAX mirror of the PyTorch module (correctness reference).
# --------------------------------------------------------------------------- #
def reference_forward(x, w, b, n_levels: int):
    log_p_diff = x.astype(jnp.float32) @ w + b                          # (B, K)
    padded = jnp.concatenate(
        [log_p_diff, jnp.zeros_like(log_p_diff[:, :1])], axis=1)        # (B, K+1)
    log_p = jnp.flip(jnp.cumsum(jnp.flip(padded, axis=1), axis=1), axis=1)
    in_size = log_p.shape[1]
    scale = in_size / n_levels
    i = jnp.arange(n_levels, dtype=jnp.float32)
    src = jnp.maximum((i + 0.5) * scale - 0.5, 0.0)
    idx0 = jnp.clip(jnp.floor(src).astype(jnp.int32), 0, in_size - 1)
    idx1 = jnp.minimum(idx0 + 1, in_size - 1)
    lam = src - idx0.astype(jnp.float32)
    return (1.0 - lam)[None, :] * log_p[:, idx0] + lam[None, :] * log_p[:, idx1]


if __name__ == "__main__":
    key = jax.random.PRNGKey(0)
    k_x, k_w, k_b = jax.random.split(key, 3)

    B, D, K = 8, 32, 7       # base_net: Linear(32 -> 7)  =>  log_p_diff (B, 7)
    n_levels = 16

    x = jax.random.normal(k_x, (B, D), dtype=jnp.float32)
    w = jax.random.normal(k_w, (D, K), dtype=jnp.float32) * 0.1
    b = jax.random.normal(k_b, (K,), dtype=jnp.float32) * 0.1

    # f32 path.
    out = jax.block_until_ready(telescopic_forward(x, w, b, n_levels))
    ref = reference_forward(x, w, b, n_levels)
    assert out.shape == (B, n_levels)
    assert jnp.allclose(out, ref, atol=1e-4, rtol=1e-4), "f32 mismatch vs reference"

    # Non-divisible batch: exercises the masked partial final block (no pad).
    B2 = 12
    x2 = jax.random.normal(k_x, (B2, D), dtype=jnp.float32)
    out2 = jax.block_until_ready(
        telescopic_forward(x2, w, b, n_levels, block_b=8))
    ref2 = reference_forward(x2, w, b, n_levels)
    assert out2.shape == (B2, n_levels)
    assert jnp.allclose(out2, ref2, atol=1e-4, rtol=1e-4), "partial-block mismatch"

    # bf16 activations (halved x HBM read stream), f32 weights + f32 accumulation.
    x_bf = x.astype(jnp.bfloat16)
    out_bf = jax.block_until_ready(telescopic_forward(x_bf, w, b, n_levels))
    ref_bf = reference_forward(x_bf.astype(jnp.float32), w, b, n_levels)
    assert jnp.allclose(out_bf, ref_bf, atol=2e-3, rtol=2e-3), "bf16 mismatch"

    print("KERNEL_OK")
</pallas_src>

<mosaic_0001>
module attributes {stable_mosaic.version = 11 : i64} {
  func.func @telescopic_kernel(%arg0: i32, %arg1: memref<8x32xf32, #tpu.memory_space<vmem>>, %arg2: memref<32x16xf32, #tpu.memory_space<vmem>>, %arg3: memref<1x16xf32, #tpu.memory_space<vmem>>, %arg4: memref<8x16xf32, #tpu.memory_space<vmem>>) attributes {dimension_semantics = [#tpu.dimension_semantics<parallel>], iteration_bounds = array<i64: 1>, scalar_prefetch = 0 : i64, scratch_operands = 0 : i64, tpu.core_type = #tpu.core_type<tc>, window_params = [{transform_indices = @transform_0, window_bounds = array<i64: 8, 32>}, {pipeline_mode = #tpu.pipeline_mode<synchronous>, transform_indices = @transform_1, window_bounds = array<i64: 32, 16>}, {pipeline_mode = #tpu.pipeline_mode<synchronous>, transform_indices = @transform_2, window_bounds = array<i64: 1, 16>}, {transform_indices = @transform_3, window_bounds = array<i64: 8, 16>}]} {
    %c0 = arith.constant 0 : index
    %c0_0 = arith.constant 0 : index
    %0 = vector.load %arg1[%c0, %c0_0] : memref<8x32xf32, #tpu.memory_space<vmem>>, vector<8x32xf32>
    %c0_1 = arith.constant 0 : index
    %c0_2 = arith.constant 0 : index
    %1 = vector.load %arg2[%c0_1, %c0_2] : memref<32x16xf32, #tpu.memory_space<vmem>>, vector<32x16xf32>
    %cst = arith.constant dense<0.000000e+00> : vector<8x16xf32>
    %2 = tpu.matmul %0, %1, %cst {dimension_numbers = #tpu.dot_dimension_numbers<[1], [0], [0], [1], [0, 0, 1, 1], [], []>} : vector<8x32xf32>, vector<32x16xf32>, vector<8x16xf32> -> vector<8x16xf32>
    %c0_3 = arith.constant 0 : index
    %c0_4 = arith.constant 0 : index
    %3 = vector.load %arg3[%c0_3, %c0_4] : memref<1x16xf32, #tpu.memory_space<vmem>>, vector<1x16xf32>
    %4 = vector.broadcast %3 : vector<1x16xf32> to vector<8x16xf32>
    %5 = arith.addf %2, %4 : vector<8x16xf32>
    %c0_5 = arith.constant 0 : index
    %c0_6 = arith.constant 0 : index
    %6 = vector.load %arg4[%c0_5, %c0_6] : memref<8x16xf32, #tpu.memory_space<vmem>>, vector<8x16xf32>
    tpu.vector_store %arg4[%c0_5, %c0_6], %5 {strides = array<i32>} : memref<8x16xf32, #tpu.memory_space<vmem>>, vector<8x16xf32>,
    return
  }
  func.func @transform_0(%arg0: i32) -> (i32, i32) {
    %c0_i32 = arith.constant 0 : i32
    %c0_i32_0 = arith.constant 0 : i32
    return %arg0, %c0_i32 : i32, i32
  }
  func.func @transform_1(%arg0: i32) -> (i32, i32) {
    %c0_i32 = arith.constant 0 : i32
    %c0_i32_0 = arith.constant 0 : i32
    %c0_i32_1 = arith.constant 0 : i32
    return %c0_i32, %c0_i32_0 : i32, i32
  }
  func.func @transform_2(%arg0: i32) -> (i32, i32) {
    %c0_i32 = arith.constant 0 : i32
    %c0_i32_0 = arith.constant 0 : i32
    %c0_i32_1 = arith.constant 0 : i32
    return %c0_i32, %c0_i32_0 : i32, i32
  }
  func.func @transform_3(%arg0: i32) -> (i32, i32) {
    %c0_i32 = arith.constant 0 : i32
    %c0_i32_0 = arith.constant 0 : i32
    return %arg0, %c0_i32 : i32, i32
  }
}

</mosaic_0001>

<llo_original>
// kernel: tpu_custom_call.1
$region0: #{tpu_custom_call.1}
  #allocation0 [shape = 'u32[]', space=smem, size = 0x4, offset = 0x4, fixed_abs, tag = 'smem constant byte address 0x4 - core index']
  #allocation1 [shape = 'u32[144,128]{1,0:T(1,128)}', space=vmem, size = 0x12000, scoped, tag = 'internal scratch']
  %s0 = inlined_call_operand.vmem [shape: f32[8,32], index: 0, kind: input, shape index: {}]
  %s1 = inlined_call_operand.vmem [shape: f32[32,16], index: 1, kind: input, shape index: {}]
  %s2 = inlined_call_operand.vmem [shape: f32[1,16], index: 2, kind: input, shape index: {}]
  %s3 = inlined_call_operand.hbm [shape: f32[8,16], index: 3, kind: output, shape index: {}]
  %s4 = sld [smem:[#allocation0]]
  $region22: #{tpu_custom_call.1} parent=0
    _
  %s6 = ssub.s32 1, %s4
  %s7 = scalar_select 0, %s6, %s4
  $region1: #{tpu_custom_call.1} parent=0
    #allocation2 [shape = 'u8[4096]{0}', space=vmem, size = 0x1000, scoped, tag = 'output window, operand 0, single buffered']
    #allocation3 [shape = 's32[1]{0}', space=sflag, size = 0x4, scoped, tag = 'scoped memory for tpu_custom_call.1']
    %8 = vsyncpa [#allocation3], 0
    // Predicated region
    $region2: #{tpu_custom_call.1} parent=1 // pred_check
      _
    $region3: #{tpu_custom_call.1} parent=1 // pred_check_branch
      %10 = sbr.rel (0) target = $region5
    $region4: #{tpu_custom_call.1} parent=1 // pred_region
      _
    $region5: #{tpu_custom_call.1} parent=1 // pred_fallthru
      _
    // Predicated region
    $region6: #{tpu_custom_call.1} parent=1 // pred_check
      _
    $region7: #{tpu_custom_call.1} parent=1 // pred_check_branch
      %12 = sbr.rel (0) target = $region9
    $region8: #{tpu_custom_call.1} parent=1 // pred_region
      _
    $region9: #{tpu_custom_call.1} parent=1 // pred_fallthru
      _
    // Predicated region
    $region10: #{tpu_custom_call.1} parent=1 // pred_check
      _
    $region11: #{tpu_custom_call.1} parent=1 // pred_check_branch
      %14 = sbr.rel (0) target = $region13
    $region12: #{tpu_custom_call.1} parent=1 // pred_region
      _
    $region13: #{tpu_custom_call.1} parent=1 // pred_fallthru
      _
    %v15 = vld [vmem:[%s0] sm:$0xff]
    %v16 = vld [vmem:[%s1] sm:$0xff]
    %v17 = vld [vmem:[%s1 + $0x8] sm:$0xff]
    %v18 = vld [vmem:[%s1 + $0x10] sm:$0xff]
    %v19 = vld [vmem:[%s1 + $0x18] sm:$0xff]
    %v20 = vld [vmem:[%s2] sm:$0x1]
    %v22 = vlaneseq
    %v23 = vshrl.u32 %v22, 7
    %v24 = vsub.s32 0, %v23
    %v25 = vrot.slane %v20, %v24
    %vm27 = vcmask 261120
    %v29 = vsel %vm27, %v15, 0
    %31 = vmatprep.subr.mxu0 0.0
    %32 = vmatpush1.msra.mxu0 %v16
    %33 = vmatprep.subr.mxu0 0.0
    %34 = vmatpush1.msra.mxu0 %v17
    %35 = vmatprep.subr.mxu0 0.0
    %36 = vmatpush1.msra.mxu0 %v18
    %37 = vmatprep.subr.mxu0 0.0
    %38 = vmatpush1.msra.mxu0 %v19
    %39 = vmatprep.subr.mxu0 0.0
    %40 = vmatpush1.msra.mxu0 0.0
    %41 = vmatprep.subr.mxu0 0.0
    %42 = vmatpush1.msra.mxu0 0.0
    %43 = vmatprep.subr.mxu0 0.0
    %44 = vmatpush1.msra.mxu0 0.0
    %45 = vmatprep.subr.mxu0 0.0
    %46 = vmatpush1.msra.mxu0 0.0
    %47 = vmatprep.subr.mxu0 0.0
    %48 = vmatpush1.msra.mxu0 0.0
    %49 = vmatprep.subr.mxu0 0.0
    %50 = vmatpush1.msra.mxu0 0.0
    %51 = vmatprep.subr.mxu0 0.0
    %52 = vmatpush1.msra.mxu0 0.0
    %53 = vmatprep.subr.mxu0 0.0
    %54 = vmatpush1.msra.mxu0 0.0
    %55 = vmatprep.subr.mxu0 0.0
    %56 = vmatpush1.msra.mxu0 0.0
    %57 = vmatprep.subr.mxu0 0.0
    %58 = vmatpush1.msra.mxu0 0.0
    %59 = vmatprep.subr.mxu0 0.0
    %60 = vmatpush1.msra.mxu0 0.0
    %61 = vmatprep.subr.mxu0 0.0
    %62 = vmatpush1.msra.mxu0 0.0
    %63 = vmatprep.subr.mxu0 0.0
    %64 = vmatpush1.msra.mxu0 0.0
    %65 = vmatprep.subr.mxu0 0.0
    %66 = vmatpush1.msra.mxu0 0.0
    %67 = vmatprep.subr.mxu0 0.0
    %68 = vmatpush1.msra.mxu0 0.0
    %69 = vmatprep.subr.mxu0 0.0
    %70 = vmatpush1.msra.mxu0 0.0
    %71 = vmatprep.subr.mxu0 0.0
    %72 = vmatpush1.msra.mxu0 0.0
    %73 = vmatprep.subr.mxu0 0.0
    %74 = vmatpush1.msra.mxu0 0.0
    %75 = vmatprep.subr.mxu0 0.0
    %76 = vmatpush1.msra.mxu0 0.0
    %77 = vmatprep.subr.mxu0 0.0
    %78 = vmatpush1.msra.mxu0 0.0
    %79 = vmatprep.subr.mxu0 0.0
    %80 = vmatpush1.msra.mxu0 0.0
    %81 = vmatprep.subr.mxu0 0.0
    %82 = vmatpush1.msra.mxu0 0.0
    %83 = vmatprep.subr.mxu0 0.0
    %84 = vmatpush1.msra.mxu0 0.0
    %85 = vmatprep.subr.mxu0 0.0
    %86 = vmatpush1.msra.mxu0 0.0
    %87 = vmatprep.subr.mxu0 0.0
    %88 = vmatpush1.msra.mxu0 0.0
    %89 = vmatprep.subr.mxu0 0.0
    %90 = vmatpush1.msra.mxu0 0.0
    %91 = vmatprep.subr.mxu0 0.0
    %92 = vmatpush1.msra.mxu0 0.0
    %93 = vmatprep.subr.mxu0 0.0
    %94 = vmatpush1.msra.mxu0 0.0
    %95 = vmatprep.mubr.f32.mxu0 0.0
    %96 = vmatmul.mubr.f32.gmra.mrb[0].mxu0 %v29
    %v97 = vpop.f32.mrb[0].mxu0
    %v98 = vadd.f32 %v25, %v97
    %v99 = vpop.f32.mrb[0].mxu0
    %100 = vdwg.mxu0
    %vm101 = vcmask 130048
    %102 = vst.msk [vmem:[#allocation2] sm:$0xff] %vm101, %v98
    // Predicated region
    $region14: #{tpu_custom_call.1} parent=1 // pred_check
      _
    $region15: #{tpu_custom_call.1} parent=1 // pred_check_branch
      %104 = sbr.rel (0) target = $region17
    $region16: #{tpu_custom_call.1} parent=1 // pred_region
      %s106 = ssub.s32 128, 128
      %107 = vsyncadd [#allocation3], %s106
      %s109 = sshll.u32 [#allocation2], 4
      %s110 = int_to_ptr.vmem [resolvable:$true] %s109
      %112 = dma.vmem_to_hbm [thread:$0]  %s110, 128, %s3, [#allocation3]
    $region17: #{tpu_custom_call.1} parent=1 // pred_fallthru
      _
    // Predicated region
    $region18: #{tpu_custom_call.1} parent=1 // pred_check
      _
    $region19: #{tpu_custom_call.1} parent=1 // pred_check_branch
      %114 = sbr.rel (0) target = $region21
    $region20: #{tpu_custom_call.1} parent=1 // pred_region
      %115 = dma.done [#allocation3], 128
    $region21: #{tpu_custom_call.1} parent=1 // pred_fallthru
      _
    %116 = vsyncpa [#allocation3], 1

</llo_original>
